<compile_context>
chip_gen: v6e
topology: v6e:2x2x1
jax: 0.10.0
libtpu: 0.0.40
codegen_flags: <defaults>
</compile_context>

<pallas_src>
import functools
import math

import jax
import jax.numpy as jnp
from jax import lax
from jax.experimental import pallas as pl
from jax.experimental.pallas import tpu as pltpu

KH = KW = 4
STRIDE = 2
PAD = 1
EPS = 1e-5
NEG_SLOPE = 0.2


def _unet_down_kernel(x_ref, w_ref, o_ref, *, normalize, w_out):
    # x_ref: (1, 8, C_in, Lq) bf16 slabs, slab idx = (kh % 2) * 4 + kw, with
    #        slab[ci, r * w_out + ox] == x_pad[ci, 2*r + kh%2, 2*ox + kw]
    # w_ref: (16, TC, C_in) bf16, tap idx = kh * 4 + kw
    # o_ref: (1, TC, P) bf16, P = h_out * w_out  (lane-dense store)
    tc = w_ref.shape[1]
    p = o_ref.shape[2]

    # Conv = 16 accumulating MXU GEMMs; every tap is a *contiguous* window of a slab.
    acc = jnp.zeros((tc, p), jnp.float32)
    for kh in range(KH):
        for kw in range(KW):
            slab = (kh % 2) * KW + kw
            off = (kh // 2) * w_out                       # row shift inside the slab
            tap = x_ref[0, slab, :, off:off + p]          # (C_in, P) bf16
            acc = acc + jnp.dot(w_ref[kh * KW + kw], tap,
                                preferred_element_type=jnp.float32)

    y = acc
    if normalize:
        # InstanceNorm2d (no affine, biased variance, eps=1e-5): two-pass f32 stats
        # over the spatial axis P; rsqrt lands on the EUP slot.
        inv_p = 1.0 / p
        mean = jnp.sum(y, axis=1, keepdims=True) * inv_p
        cen = y - mean
        var = jnp.sum(cen * cen, axis=1, keepdims=True) * inv_p
        y = cen * lax.rsqrt(var + EPS)

    # LeakyReLU(0.2)
    y = jnp.where(y > 0, y, NEG_SLOPE * y)
    o_ref[0] = y.astype(o_ref.dtype)


def _space_to_taps(x_nchw, h_out, w_out, dtype):
    """(N, C_in, H, W) -> (N, 8, C_in, (h_out+1)*w_out) bf16 stride-phase slabs.

    slab[(kh%2)*4 + kw][ci, r*w_out + ox] == x_pad[ci, 2*r + kh%2, 2*ox + kw], so the
    conv tap (kh, kw) is the contiguous window [ (kh//2)*w_out : (kh//2)*w_out + P ].
    Total size ~2x the input elements in bf16 (vs 4x for a full im2col).
    """
    n, c, _, _ = x_nchw.shape
    x_pad = jnp.pad(x_nchw.astype(dtype), ((0, 0), (0, 0), (PAD, PAD), (PAD, PAD)))
    slabs = []
    for rp in range(STRIDE):                 # row parity = kh % 2
        for kw in range(KW):                 # column tap
            s = x_pad[:, :, rp::STRIDE, kw:kw + STRIDE * w_out:STRIDE]
            slabs.append(s[:, :, :h_out + 1, :])          # exactly h_out+1 rows
    taps = jnp.stack(slabs, axis=1)          # (N, 8, C_in, h_out+1, w_out)
    return taps.reshape(n, STRIDE * KW, c, (h_out + 1) * w_out)


def _pick_channel_tile(c_out, n, p):
    """Bound the live f32 (TC, P) accumulator and keep >= 2 grid steps at batch 1."""
    cap = min(256, max(8, (8 * 1024 * 1024) // (4 * max(p, 1))))
    if c_out <= cap:
        tc = c_out
    else:
        tc = c_out                           # fallback: full dim (correctness first)
        for d in range(1, cap + 1):          # largest multiple-of-8 divisor <= cap
            if c_out % d == 0 and d % 8 == 0:
                tc = d
    # Give both v7x TensorCores work for batch-1 inference (no effect on v5e/v6e).
    if n * (c_out // tc) < 2 and tc % 2 == 0 and (tc // 2) % 8 == 0:
        tc //= 2
    return tc


def _vmem_limit_bytes(taps_blk, w_blk, out_blk, out_itemsize):
    taps_b = math.prod(taps_blk) * 2
    w_b = math.prod(w_blk) * 2
    out_b = math.prod(out_blk) * out_itemsize
    acc_b = math.prod(out_blk) * 4
    # double-buffered pipeline stages + f32 accumulator / tap-staging headroom
    need = 2 * (taps_b + w_b + out_b) + 4 * acc_b + (4 << 20)
    try:
        cap = int(getattr(pltpu.get_tpu_info(), "vmem_capacity_bytes", 64 << 20))
    except Exception:  # pragma: no cover - conservative fallback (v7x-sized)
        cap = 64 << 20
    return int(min(max(need, 32 << 20), int(0.85 * cap)))


def unet_down(x_nchw, weight_oihw, normalize=True, out_dtype=jnp.bfloat16):
    """Forward pass of UNetDown. x: (N, C_in, H, W) NCHW; weight: (C_out, C_in, 4, 4)."""
    n, c_in, h, w = x_nchw.shape
    c_out = weight_oihw.shape[0]
    h_out = (h + 2 * PAD - KH) // STRIDE + 1
    w_out = (w + 2 * PAD - KW) // STRIDE + 1
    p = h_out * w_out
    lq = (h_out + 1) * w_out

    taps = _space_to_taps(x_nchw, h_out, w_out, jnp.bfloat16)       # (N, 8, C_in, Lq)
    # weight (C_out, C_in, 4, 4) -> (16, C_out, C_in), tap-major index kh*4 + kw
    w_k = jnp.transpose(weight_oihw, (2, 3, 0, 1)).reshape(KH * KW, c_out, c_in)
    w_k = w_k.astype(jnp.bfloat16)

    tc = _pick_channel_tile(c_out, n, p)
    assert c_out % tc == 0

    taps_blk = (1, STRIDE * KW, c_in, lq)
    w_blk = (KH * KW, tc, c_in)
    out_blk = (1, tc, p)
    out_itemsize = jnp.dtype(out_dtype).itemsize

    cost = pl.CostEstimate(
        flops=2 * n * c_out * p * (c_in * KH * KW),
        transcendentals=(n * c_out) if normalize else 0,
        bytes_accessed=(taps.size * 2 + w_k.size * 2 + n * c_out * p * out_itemsize),
    )

    kernel = functools.partial(_unet_down_kernel, normalize=normalize, w_out=w_out)

    out = pl.pallas_call(
        kernel,
        out_shape=jax.ShapeDtypeStruct((n, c_out, p), out_dtype),
        grid_spec=pltpu.PrefetchScalarGridSpec(
            num_scalar_prefetch=0,
            grid=(n, c_out // tc),
            in_specs=[
                pl.BlockSpec(taps_blk, lambda i, j: (i, 0, 0, 0)),   # slabs (reused over j)
                pl.BlockSpec(w_blk, lambda i, j: (0, j, 0)),         # weight taps
            ],
            out_specs=pl.BlockSpec(out_blk, lambda i, j: (i, j, 0)),
        ),
        compiler_params=pltpu.CompilerParams(
            dimension_semantics=("parallel", "parallel"),
            vmem_limit_bytes=_vmem_limit_bytes(taps_blk, w_blk, out_blk, out_itemsize),
        ),
        cost_estimate=cost,
    )(taps, w_k)

    # (N, C_out, P) is channel-major already: contiguous reshape to NCHW, no transpose.
    return out.reshape(n, c_out, h_out, w_out)


def _reference(x_nchw, weight_oihw, normalize=True):
    # Mirror the kernel's mixed precision: bf16 conv operands, f32 accumulation/stats.
    y = lax.conv_general_dilated(
        x_nchw.astype(jnp.bfloat16), weight_oihw.astype(jnp.bfloat16),
        window_strides=(STRIDE, STRIDE),
        padding=((PAD, PAD), (PAD, PAD)),
        dimension_numbers=("NCHW", "OIHW", "NCHW"),
        preferred_element_type=jnp.float32,
    )
    if normalize:
        mean = jnp.mean(y, axis=(2, 3), keepdims=True)
        var = jnp.mean((y - mean) ** 2, axis=(2, 3), keepdims=True)
        y = (y - mean) * lax.rsqrt(var + EPS)
    return jnp.where(y > 0, y, NEG_SLOPE * y)


if __name__ == "__main__":
    key = jax.random.PRNGKey(0)
    kx, kw_key = jax.random.split(key)

    N, C_in, H, W = 2, 4, 16, 16
    C_out = 8

    x = jax.random.normal(kx, (N, C_in, H, W), dtype=jnp.float32)
    # nn.Conv2d(in_size, out_size, 4, 2, 1, bias=False) weight shape: (C_out, C_in, 4, 4)
    weight = 0.1 * jax.random.normal(kw_key, (C_out, C_in, KH, KW), dtype=jnp.float32)

    out = jax.block_until_ready(unet_down(x, weight, normalize=True))
    ref = _reference(x, weight, normalize=True)
    assert out.shape == (N, C_out, H // 2, W // 2)
    err = float(jnp.max(jnp.abs(out.astype(jnp.float32) - ref)))
    assert err < 3e-2, err

    # Also exercise the normalize=False configuration of the module.
    out_nn = jax.block_until_ready(unet_down(x, weight, normalize=False))
    ref_nn = _reference(x, weight, normalize=False)
    err_nn = float(jnp.max(jnp.abs(out_nn.astype(jnp.float32) - ref_nn)))
    assert err_nn < 3e-2, err_nn

    print("KERNEL_OK")
</pallas_src>

<mosaic_0001>
module attributes {stable_mosaic.version = 11 : i64} {
  func.func @_unet_down_kernel(%arg0: i32, %arg1: i32, %arg2: memref<1x8x4x72xbf16, #tpu.memory_space<vmem>>, %arg3: memref<16x8x4xbf16, #tpu.memory_space<vmem>>, %arg4: memref<1x8x64xbf16, #tpu.memory_space<vmem>>) attributes {dimension_semantics = [#tpu.dimension_semantics<parallel>, #tpu.dimension_semantics<parallel>], iteration_bounds = array<i64: 2, 1>, scalar_prefetch = 0 : i64, scratch_operands = 0 : i64, tpu.core_type = #tpu.core_type<tc>, window_params = [{transform_indices = @transform_0, window_bounds = array<i64: 1, 8, 4, 72>}, {transform_indices = @transform_1, window_bounds = array<i64: 16, 8, 4>}, {transform_indices = @transform_2, window_bounds = array<i64: 1, 8, 64>}]} {
    %cst = arith.constant 0.000000e+00 : f32
    %0 = vector.broadcast %cst : f32 to vector<8x64xf32>
    %c0 = arith.constant 0 : index
    %c0_0 = arith.constant 0 : index
    %c0_1 = arith.constant 0 : index
    %c0_2 = arith.constant 0 : index
    %1 = vector.load %arg2[%c0, %c0_0, %c0_1, %c0_2] : memref<1x8x4x72xbf16, #tpu.memory_space<vmem>>, vector<1x1x4x64xbf16>
    %2 = vector.shape_cast %1 : vector<1x1x4x64xbf16> to vector<4x64xbf16>
    %c0_3 = arith.constant 0 : index
    %c0_4 = arith.constant 0 : index
    %c0_5 = arith.constant 0 : index
    %3 = vector.load %arg3[%c0_3, %c0_4, %c0_5] : memref<16x8x4xbf16, #tpu.memory_space<vmem>>, vector<1x8x4xbf16>
    %4 = vector.shape_cast %3 : vector<1x8x4xbf16> to vector<8x4xbf16>
    %cst_6 = arith.constant dense<0.000000e+00> : vector<8x64xf32>
    %5 = tpu.matmul %4, %2, %cst_6 {dimension_numbers = #tpu.dot_dimension_numbers<[1], [0], [0], [1], [0, 0, 1, 1], [], []>} : vector<8x4xbf16>, vector<4x64xbf16>, vector<8x64xf32> -> vector<8x64xf32>
    %6 = arith.addf %0, %5 : vector<8x64xf32>
    %c0_7 = arith.constant 0 : index
    %c1 = arith.constant 1 : index
    %c0_8 = arith.constant 0 : index
    %c0_9 = arith.constant 0 : index
    %7 = vector.load %arg2[%c0_7, %c1, %c0_8, %c0_9] : memref<1x8x4x72xbf16, #tpu.memory_space<vmem>>, vector<1x1x4x64xbf16>
    %8 = vector.shape_cast %7 : vector<1x1x4x64xbf16> to vector<4x64xbf16>
    %c1_10 = arith.constant 1 : index
    %c0_11 = arith.constant 0 : index
    %c0_12 = arith.constant 0 : index
    %9 = vector.load %arg3[%c1_10, %c0_11, %c0_12] : memref<16x8x4xbf16, #tpu.memory_space<vmem>>, vector<1x8x4xbf16>
    %10 = vector.shape_cast %9 : vector<1x8x4xbf16> to vector<8x4xbf16>
    %cst_13 = arith.constant dense<0.000000e+00> : vector<8x64xf32>
    %11 = tpu.matmul %10, %8, %cst_13 {dimension_numbers = #tpu.dot_dimension_numbers<[1], [0], [0], [1], [0, 0, 1, 1], [], []>} : vector<8x4xbf16>, vector<4x64xbf16>, vector<8x64xf32> -> vector<8x64xf32>
    %12 = arith.addf %6, %11 : vector<8x64xf32>
    %c0_14 = arith.constant 0 : index
    %c2 = arith.constant 2 : index
    %c0_15 = arith.constant 0 : index
    %c0_16 = arith.constant 0 : index
    %13 = vector.load %arg2[%c0_14, %c2, %c0_15, %c0_16] : memref<1x8x4x72xbf16, #tpu.memory_space<vmem>>, vector<1x1x4x64xbf16>
    %14 = vector.shape_cast %13 : vector<1x1x4x64xbf16> to vector<4x64xbf16>
    %c2_17 = arith.constant 2 : index
    %c0_18 = arith.constant 0 : index
    %c0_19 = arith.constant 0 : index
    %15 = vector.load %arg3[%c2_17, %c0_18, %c0_19] : memref<16x8x4xbf16, #tpu.memory_space<vmem>>, vector<1x8x4xbf16>
    %16 = vector.shape_cast %15 : vector<1x8x4xbf16> to vector<8x4xbf16>
    %cst_20 = arith.constant dense<0.000000e+00> : vector<8x64xf32>
    %17 = tpu.matmul %16, %14, %cst_20 {dimension_numbers = #tpu.dot_dimension_numbers<[1], [0], [0], [1], [0, 0, 1, 1], [], []>} : vector<8x4xbf16>, vector<4x64xbf16>, vector<8x64xf32> -> vector<8x64xf32>
    %18 = arith.addf %12, %17 : vector<8x64xf32>
    %c0_21 = arith.constant 0 : index
    %c3 = arith.constant 3 : index
    %c0_22 = arith.constant 0 : index
    %c0_23 = arith.constant 0 : index
    %19 = vector.load %arg2[%c0_21, %c3, %c0_22, %c0_23] : memref<1x8x4x72xbf16, #tpu.memory_space<vmem>>, vector<1x1x4x64xbf16>
    %20 = vector.shape_cast %19 : vector<1x1x4x64xbf16> to vector<4x64xbf16>
    %c3_24 = arith.constant 3 : index
    %c0_25 = arith.constant 0 : index
    %c0_26 = arith.constant 0 : index
    %21 = vector.load %arg3[%c3_24, %c0_25, %c0_26] : memref<16x8x4xbf16, #tpu.memory_space<vmem>>, vector<1x8x4xbf16>
    %22 = vector.shape_cast %21 : vector<1x8x4xbf16> to vector<8x4xbf16>
    %cst_27 = arith.constant dense<0.000000e+00> : vector<8x64xf32>
    %23 = tpu.matmul %22, %20, %cst_27 {dimension_numbers = #tpu.dot_dimension_numbers<[1], [0], [0], [1], [0, 0, 1, 1], [], []>} : vector<8x4xbf16>, vector<4x64xbf16>, vector<8x64xf32> -> vector<8x64xf32>
    %24 = arith.addf %18, %23 : vector<8x64xf32>
    %c0_28 = arith.constant 0 : index
    %c4 = arith.constant 4 : index
    %c0_29 = arith.constant 0 : index
    %c0_30 = arith.constant 0 : index
    %25 = vector.load %arg2[%c0_28, %c4, %c0_29, %c0_30] : memref<1x8x4x72xbf16, #tpu.memory_space<vmem>>, vector<1x1x4x64xbf16>
    %26 = vector.shape_cast %25 : vector<1x1x4x64xbf16> to vector<4x64xbf16>
    %c4_31 = arith.constant 4 : index
    %c0_32 = arith.constant 0 : index
    %c0_33 = arith.constant 0 : index
    %27 = vector.load %arg3[%c4_31, %c0_32, %c0_33] : memref<16x8x4xbf16, #tpu.memory_space<vmem>>, vector<1x8x4xbf16>
    %28 = vector.shape_cast %27 : vector<1x8x4xbf16> to vector<8x4xbf16>
    %cst_34 = arith.constant dense<0.000000e+00> : vector<8x64xf32>
    %29 = tpu.matmul %28, %26, %cst_34 {dimension_numbers = #tpu.dot_dimension_numbers<[1], [0], [0], [1], [0, 0, 1, 1], [], []>} : vector<8x4xbf16>, vector<4x64xbf16>, vector<8x64xf32> -> vector<8x64xf32>
    %30 = arith.addf %24, %29 : vector<8x64xf32>
    %c0_35 = arith.constant 0 : index
    %c5 = arith.constant 5 : index
    %c0_36 = arith.constant 0 : index
    %c0_37 = arith.constant 0 : index
    %31 = vector.load %arg2[%c0_35, %c5, %c0_36, %c0_37] : memref<1x8x4x72xbf16, #tpu.memory_space<vmem>>, vector<1x1x4x64xbf16>
    %32 = vector.shape_cast %31 : vector<1x1x4x64xbf16> to vector<4x64xbf16>
    %c5_38 = arith.constant 5 : index
    %c0_39 = arith.constant 0 : index
    %c0_40 = arith.constant 0 : index
    %33 = vector.load %arg3[%c5_38, %c0_39, %c0_40] : memref<16x8x4xbf16, #tpu.memory_space<vmem>>, vector<1x8x4xbf16>
    %34 = vector.shape_cast %33 : vector<1x8x4xbf16> to vector<8x4xbf16>
    %cst_41 = arith.constant dense<0.000000e+00> : vector<8x64xf32>
    %35 = tpu.matmul %34, %32, %cst_41 {dimension_numbers = #tpu.dot_dimension_numbers<[1], [0], [0], [1], [0, 0, 1, 1], [], []>} : vector<8x4xbf16>, vector<4x64xbf16>, vector<8x64xf32> -> vector<8x64xf32>
    %36 = arith.addf %30, %35 : vector<8x64xf32>
    %c0_42 = arith.constant 0 : index
    %c6 = arith.constant 6 : index
    %c0_43 = arith.constant 0 : index
    %c0_44 = arith.constant 0 : index
    %37 = vector.load %arg2[%c0_42, %c6, %c0_43, %c0_44] : memref<1x8x4x72xbf16, #tpu.memory_space<vmem>>, vector<1x1x4x64xbf16>
    %38 = vector.shape_cast %37 : vector<1x1x4x64xbf16> to vector<4x64xbf16>
    %c6_45 = arith.constant 6 : index
    %c0_46 = arith.constant 0 : index
    %c0_47 = arith.constant 0 : index
    %39 = vector.load %arg3[%c6_45, %c0_46, %c0_47] : memref<16x8x4xbf16, #tpu.memory_space<vmem>>, vector<1x8x4xbf16>
    %40 = vector.shape_cast %39 : vector<1x8x4xbf16> to vector<8x4xbf16>
    %cst_48 = arith.constant dense<0.000000e+00> : vector<8x64xf32>
    %41 = tpu.matmul %40, %38, %cst_48 {dimension_numbers = #tpu.dot_dimension_numbers<[1], [0], [0], [1], [0, 0, 1, 1], [], []>} : vector<8x4xbf16>, vector<4x64xbf16>, vector<8x64xf32> -> vector<8x64xf32>
    %42 = arith.addf %36, %41 : vector<8x64xf32>
    %c0_49 = arith.constant 0 : index
    %c7 = arith.constant 7 : index
    %c0_50 = arith.constant 0 : index
    %c0_51 = arith.constant 0 : index
    %43 = vector.load %arg2[%c0_49, %c7, %c0_50, %c0_51] : memref<1x8x4x72xbf16, #tpu.memory_space<vmem>>, vector<1x1x4x64xbf16>
    %44 = vector.shape_cast %43 : vector<1x1x4x64xbf16> to vector<4x64xbf16>
    %c7_52 = arith.constant 7 : index
    %c0_53 = arith.constant 0 : index
    %c0_54 = arith.constant 0 : index
    %45 = vector.load %arg3[%c7_52, %c0_53, %c0_54] : memref<16x8x4xbf16, #tpu.memory_space<vmem>>, vector<1x8x4xbf16>
    %46 = vector.shape_cast %45 : vector<1x8x4xbf16> to vector<8x4xbf16>
    %cst_55 = arith.constant dense<0.000000e+00> : vector<8x64xf32>
    %47 = tpu.matmul %46, %44, %cst_55 {dimension_numbers = #tpu.dot_dimension_numbers<[1], [0], [0], [1], [0, 0, 1, 1], [], []>} : vector<8x4xbf16>, vector<4x64xbf16>, vector<8x64xf32> -> vector<8x64xf32>
    %48 = arith.addf %42, %47 : vector<8x64xf32>
    %c0_56 = arith.constant 0 : index
    %c0_57 = arith.constant 0 : index
    %c0_58 = arith.constant 0 : index
    %c8 = arith.constant 8 : index
    %49 = vector.load %arg2[%c0_56, %c0_57, %c0_58, %c8] : memref<1x8x4x72xbf16, #tpu.memory_space<vmem>>, vector<1x1x4x64xbf16>
    %50 = vector.shape_cast %49 : vector<1x1x4x64xbf16> to vector<4x64xbf16>
    %c8_59 = arith.constant 8 : index
    %c0_60 = arith.constant 0 : index
    %c0_61 = arith.constant 0 : index
    %51 = vector.load %arg3[%c8_59, %c0_60, %c0_61] : memref<16x8x4xbf16, #tpu.memory_space<vmem>>, vector<1x8x4xbf16>
    %52 = vector.shape_cast %51 : vector<1x8x4xbf16> to vector<8x4xbf16>
    %cst_62 = arith.constant dense<0.000000e+00> : vector<8x64xf32>
    %53 = tpu.matmul %52, %50, %cst_62 {dimension_numbers = #tpu.dot_dimension_numbers<[1], [0], [0], [1], [0, 0, 1, 1], [], []>} : vector<8x4xbf16>, vector<4x64xbf16>, vector<8x64xf32> -> vector<8x64xf32>
    %54 = arith.addf %48, %53 : vector<8x64xf32>
    %c0_63 = arith.constant 0 : index
    %c1_64 = arith.constant 1 : index
    %c0_65 = arith.constant 0 : index
    %c8_66 = arith.constant 8 : index
    %55 = vector.load %arg2[%c0_63, %c1_64, %c0_65, %c8_66] : memref<1x8x4x72xbf16, #tpu.memory_space<vmem>>, vector<1x1x4x64xbf16>
    %56 = vector.shape_cast %55 : vector<1x1x4x64xbf16> to vector<4x64xbf16>
    %c9 = arith.constant 9 : index
    %c0_67 = arith.constant 0 : index
    %c0_68 = arith.constant 0 : index
    %57 = vector.load %arg3[%c9, %c0_67, %c0_68] : memref<16x8x4xbf16, #tpu.memory_space<vmem>>, vector<1x8x4xbf16>
    %58 = vector.shape_cast %57 : vector<1x8x4xbf16> to vector<8x4xbf16>
    %cst_69 = arith.constant dense<0.000000e+00> : vector<8x64xf32>
    %59 = tpu.matmul %58, %56, %cst_69 {dimension_numbers = #tpu.dot_dimension_numbers<[1], [0], [0], [1], [0, 0, 1, 1], [], []>} : vector<8x4xbf16>, vector<4x64xbf16>, vector<8x64xf32> -> vector<8x64xf32>
    %60 = arith.addf %54, %59 : vector<8x64xf32>
    %c0_70 = arith.constant 0 : index
    %c2_71 = arith.constant 2 : index
    %c0_72 = arith.constant 0 : index
    %c8_73 = arith.constant 8 : index
    %61 = vector.load %arg2[%c0_70, %c2_71, %c0_72, %c8_73] : memref<1x8x4x72xbf16, #tpu.memory_space<vmem>>, vector<1x1x4x64xbf16>
    %62 = vector.shape_cast %61 : vector<1x1x4x64xbf16> to vector<4x64xbf16>
    %c10 = arith.constant 10 : index
    %c0_74 = arith.constant 0 : index
    %c0_75 = arith.constant 0 : index
    %63 = vector.load %arg3[%c10, %c0_74, %c0_75] : memref<16x8x4xbf16, #tpu.memory_space<vmem>>, vector<1x8x4xbf16>
    %64 = vector.shape_cast %63 : vector<1x8x4xbf16> to vector<8x4xbf16>
    %cst_76 = arith.constant dense<0.000000e+00> : vector<8x64xf32>
    %65 = tpu.matmul %64, %62, %cst_76 {dimension_numbers = #tpu.dot_dimension_numbers<[1], [0], [0], [1], [0, 0, 1, 1], [], []>} : vector<8x4xbf16>, vector<4x64xbf16>, vector<8x64xf32> -> vector<8x64xf32>
    %66 = arith.addf %60, %65 : vector<8x64xf32>
    %c0_77 = arith.constant 0 : index
    %c3_78 = arith.constant 3 : index
    %c0_79 = arith.constant 0 : index
    %c8_80 = arith.constant 8 : index
    %67 = vector.load %arg2[%c0_77, %c3_78, %c0_79, %c8_80] : memref<1x8x4x72xbf16, #tpu.memory_space<vmem>>, vector<1x1x4x64xbf16>
    %68 = vector.shape_cast %67 : vector<1x1x4x64xbf16> to vector<4x64xbf16>
    %c11 = arith.constant 11 : index
    %c0_81 = arith.constant 0 : index
    %c0_82 = arith.constant 0 : index
    %69 = vector.load %arg3[%c11, %c0_81, %c0_82] : memref<16x8x4xbf16, #tpu.memory_space<vmem>>, vector<1x8x4xbf16>
    %70 = vector.shape_cast %69 : vector<1x8x4xbf16> to vector<8x4xbf16>
    %cst_83 = arith.constant dense<0.000000e+00> : vector<8x64xf32>
    %71 = tpu.matmul %70, %68, %cst_83 {dimension_numbers = #tpu.dot_dimension_numbers<[1], [0], [0], [1], [0, 0, 1, 1], [], []>} : vector<8x4xbf16>, vector<4x64xbf16>, vector<8x64xf32> -> vector<8x64xf32>
    %72 = arith.addf %66, %71 : vector<8x64xf32>
    %c0_84 = arith.constant 0 : index
    %c4_85 = arith.constant 4 : index
    %c0_86 = arith.constant 0 : index
    %c8_87 = arith.constant 8 : index
    %73 = vector.load %arg2[%c0_84, %c4_85, %c0_86, %c8_87] : memref<1x8x4x72xbf16, #tpu.memory_space<vmem>>, vector<1x1x4x64xbf16>
    %74 = vector.shape_cast %73 : vector<1x1x4x64xbf16> to vector<4x64xbf16>
    %c12 = arith.constant 12 : index
    %c0_88 = arith.constant 0 : index
    %c0_89 = arith.constant 0 : index
    %75 = vector.load %arg3[%c12, %c0_88, %c0_89] : memref<16x8x4xbf16, #tpu.memory_space<vmem>>, vector<1x8x4xbf16>
    %76 = vector.shape_cast %75 : vector<1x8x4xbf16> to vector<8x4xbf16>
    %cst_90 = arith.constant dense<0.000000e+00> : vector<8x64xf32>
    %77 = tpu.matmul %76, %74, %cst_90 {dimension_numbers = #tpu.dot_dimension_numbers<[1], [0], [0], [1], [0, 0, 1, 1], [], []>} : vector<8x4xbf16>, vector<4x64xbf16>, vector<8x64xf32> -> vector<8x64xf32>
    %78 = arith.addf %72, %77 : vector<8x64xf32>
    %c0_91 = arith.constant 0 : index
    %c5_92 = arith.constant 5 : index
    %c0_93 = arith.constant 0 : index
    %c8_94 = arith.constant 8 : index
    %79 = vector.load %arg2[%c0_91, %c5_92, %c0_93, %c8_94] : memref<1x8x4x72xbf16, #tpu.memory_space<vmem>>, vector<1x1x4x64xbf16>
    %80 = vector.shape_cast %79 : vector<1x1x4x64xbf16> to vector<4x64xbf16>
    %c13 = arith.constant 13 : index
    %c0_95 = arith.constant 0 : index
    %c0_96 = arith.constant 0 : index
    %81 = vector.load %arg3[%c13, %c0_95, %c0_96] : memref<16x8x4xbf16, #tpu.memory_space<vmem>>, vector<1x8x4xbf16>
    %82 = vector.shape_cast %81 : vector<1x8x4xbf16> to vector<8x4xbf16>
    %cst_97 = arith.constant dense<0.000000e+00> : vector<8x64xf32>
    %83 = tpu.matmul %82, %80, %cst_97 {dimension_numbers = #tpu.dot_dimension_numbers<[1], [0], [0], [1], [0, 0, 1, 1], [], []>} : vector<8x4xbf16>, vector<4x64xbf16>, vector<8x64xf32> -> vector<8x64xf32>
    %84 = arith.addf %78, %83 : vector<8x64xf32>
    %c0_98 = arith.constant 0 : index
    %c6_99 = arith.constant 6 : index
    %c0_100 = arith.constant 0 : index
    %c8_101 = arith.constant 8 : index
    %85 = vector.load %arg2[%c0_98, %c6_99, %c0_100, %c8_101] : memref<1x8x4x72xbf16, #tpu.memory_space<vmem>>, vector<1x1x4x64xbf16>
    %86 = vector.shape_cast %85 : vector<1x1x4x64xbf16> to vector<4x64xbf16>
    %c14 = arith.constant 14 : index
    %c0_102 = arith.constant 0 : index
    %c0_103 = arith.constant 0 : index
    %87 = vector.load %arg3[%c14, %c0_102, %c0_103] : memref<16x8x4xbf16, #tpu.memory_space<vmem>>, vector<1x8x4xbf16>
    %88 = vector.shape_cast %87 : vector<1x8x4xbf16> to vector<8x4xbf16>
    %cst_104 = arith.constant dense<0.000000e+00> : vector<8x64xf32>
    %89 = tpu.matmul %88, %86, %cst_104 {dimension_numbers = #tpu.dot_dimension_numbers<[1], [0], [0], [1], [0, 0, 1, 1], [], []>} : vector<8x4xbf16>, vector<4x64xbf16>, vector<8x64xf32> -> vector<8x64xf32>
    %90 = arith.addf %84, %89 : vector<8x64xf32>
    %c0_105 = arith.constant 0 : index
    %c7_106 = arith.constant 7 : index
    %c0_107 = arith.constant 0 : index
    %c8_108 = arith.constant 8 : index
    %91 = vector.load %arg2[%c0_105, %c7_106, %c0_107, %c8_108] : memref<1x8x4x72xbf16, #tpu.memory_space<vmem>>, vector<1x1x4x64xbf16>
    %92 = vector.shape_cast %91 : vector<1x1x4x64xbf16> to vector<4x64xbf16>
    %c15 = arith.constant 15 : index
    %c0_109 = arith.constant 0 : index
    %c0_110 = arith.constant 0 : index
    %93 = vector.load %arg3[%c15, %c0_109, %c0_110] : memref<16x8x4xbf16, #tpu.memory_space<vmem>>, vector<1x8x4xbf16>
    %94 = vector.shape_cast %93 : vector<1x8x4xbf16> to vector<8x4xbf16>
    %cst_111 = arith.constant dense<0.000000e+00> : vector<8x64xf32>
    %95 = tpu.matmul %94, %92, %cst_111 {dimension_numbers = #tpu.dot_dimension_numbers<[1], [0], [0], [1], [0, 0, 1, 1], [], []>} : vector<8x4xbf16>, vector<4x64xbf16>, vector<8x64xf32> -> vector<8x64xf32>
    %96 = arith.addf %90, %95 : vector<8x64xf32>
    %cst_112 = arith.constant dense<0.000000e+00> : vector<8xf32>
    %97 = vector.multi_reduction <add>, %96, %cst_112 [1] : vector<8x64xf32> to vector<8xf32>
    %98 = vector.shape_cast %97 : vector<8xf32> to vector<8x1xf32>
    %cst_113 = arith.constant 1.562500e-02 : f32
    %99 = vector.broadcast %cst_113 : f32 to vector<8x1xf32>
    %100 = arith.mulf %98, %99 : vector<8x1xf32>
    %101 = vector.broadcast %100 : vector<8x1xf32> to vector<8x64xf32>
    %102 = arith.subf %96, %101 : vector<8x64xf32>
    %103 = arith.mulf %102, %102 : vector<8x64xf32>
    %cst_114 = arith.constant dense<0.000000e+00> : vector<8xf32>
    %104 = vector.multi_reduction <add>, %103, %cst_114 [1] : vector<8x64xf32> to vector<8xf32>
    %105 = vector.shape_cast %104 : vector<8xf32> to vector<8x1xf32>
    %cst_115 = arith.constant 1.562500e-02 : f32
    %106 = vector.broadcast %cst_115 : f32 to vector<8x1xf32>
    %107 = arith.mulf %105, %106 : vector<8x1xf32>
    %cst_116 = arith.constant 9.99999974E-6 : f32
    %108 = vector.broadcast %cst_116 : f32 to vector<8x1xf32>
    %109 = arith.addf %107, %108 : vector<8x1xf32>
    %110 = math.rsqrt %109 : vector<8x1xf32>
    %111 = vector.broadcast %110 : vector<8x1xf32> to vector<8x64xf32>
    %112 = arith.mulf %102, %111 : vector<8x64xf32>
    %cst_117 = arith.constant 0.000000e+00 : f32
    %113 = vector.broadcast %cst_117 : f32 to vector<8x64xf32>
    %114 = arith.cmpf ogt, %112, %113 : vector<8x64xf32>
    %cst_118 = arith.constant 2.000000e-01 : f32
    %115 = vector.broadcast %cst_118 : f32 to vector<8x64xf32>
    %116 = arith.mulf %115, %112 : vector<8x64xf32>
    %117 = arith.select %114, %112, %116 : vector<8x64xi1>, vector<8x64xf32>
    %118 = arith.truncf %117 : vector<8x64xf32> to vector<8x64xbf16>
    %c0_119 = arith.constant 0 : index
    %c0_120 = arith.constant 0 : index
    %c0_121 = arith.constant 0 : index
    %119 = vector.load %arg4[%c0_119, %c0_120, %c0_121] : memref<1x8x64xbf16, #tpu.memory_space<vmem>>, vector<1x8x64xbf16>
    %120 = vector.shape_cast %119 : vector<1x8x64xbf16> to vector<8x64xbf16>
    %121 = vector.shape_cast %118 : vector<8x64xbf16> to vector<1x8x64xbf16>
    tpu.vector_store %arg4[%c0_119, %c0_120, %c0_121], %121 {strides = array<i32>} : memref<1x8x64xbf16, #tpu.memory_space<vmem>>, vector<1x8x64xbf16>,
    return
  }
  func.func @transform_0(%arg0: i32, %arg1: i32) -> (i32, i32, i32, i32) {
    %c0_i32 = arith.constant 0 : i32
    %c0_i32_0 = arith.constant 0 : i32
    %c0_i32_1 = arith.constant 0 : i32
    %c0_i32_2 = arith.constant 0 : i32
    return %arg0, %c0_i32, %c0_i32_0, %c0_i32_1 : i32, i32, i32, i32
  }
  func.func @transform_1(%arg0: i32, %arg1: i32) -> (i32, i32, i32) {
    %c0_i32 = arith.constant 0 : i32
    %c0_i32_0 = arith.constant 0 : i32
    %c0_i32_1 = arith.constant 0 : i32
    return %c0_i32, %arg1, %c0_i32_0 : i32, i32, i32
  }
  func.func @transform_2(%arg0: i32, %arg1: i32) -> (i32, i32, i32) {
    %c0_i32 = arith.constant 0 : i32
    %c0_i32_0 = arith.constant 0 : i32
    return %arg0, %arg1, %c0_i32 : i32, i32, i32
  }
}

</mosaic_0001>

<llo_original>
// kernel: tpu_custom_call.1
$region0: #{tpu_custom_call.1}
  #allocation0 [shape = 'u32[]', space=smem, size = 0x4, offset = 0x4, fixed_abs, tag = 'smem constant byte address 0x4 - core index']
  #allocation1 [shape = 'u32[144,128]{1,0:T(1,128)}', space=vmem, size = 0x12000, scoped, tag = 'internal scratch']
  %s0 = inlined_call_operand.vmem [shape: bf16[2,8,4,72], index: 0, kind: input, shape index: {}]
  %s1 = inlined_call_operand.vmem [shape: bf16[16,8,4], index: 1, kind: input, shape index: {}]
  %s2 = inlined_call_operand.hbm [shape: bf16[2,8,64], index: 2, kind: output, shape index: {}]
  %s3 = sld [smem:[#allocation0]]
  $region41: #{tpu_custom_call.1} parent=0
    _
  %s5 = ssub.s32 1, %s3
  %s6 = scalar_select 0, %s5, %s3
  $region1: #{tpu_custom_call.1} parent=0
    #allocation2 [shape = 'u8[4096]{0}', space=vmem, size = 0x1000, scoped, tag = 'output window, operand 0']
    #allocation3 [shape = 's32[2]{0}', space=sflag, size = 0x8, scoped, tag = 'scoped memory for tpu_custom_call.1']
    %7 = vsyncpa [#allocation3], 0
    %s8 = scalar_lea.sflag [#allocation3], 1
    %9 = vsyncpa %s8, 0
    loop: start=0, step=1, limit=4
    $region2: #{tpu_custom_call.1} parent=1 // loop_pre_header
      _
    $region3: #{tpu_custom_call.1} parent=1 // loop_header
      %s11 = sphi 0, %s15
      %p12 = scmp.ge.s32.totalorder %s11, 4
      %s18 = sphi 0, %s30
      %s19 = sphi 0, %s26
      %s20 = sphi 0, %s18
      %s21 = sphi 0, %s19
      %s22 = sphi 0, %s20
      %s23 = sphi 0, %s21
      %s33 = sphi 0, %s35
      %s36 = sphi 0, %s33
      %s37 = sphi 0, %s36
      %s53 = sphi 0, %s37
      %s59 = sphi 0, %s61
      %s62 = sphi 0, %s59
      %s63 = sphi 0, %s62
      %s79 = sphi 0, %s63
      %s87 = sphi 0, %s89
      %s90 = sphi 0, %s87
      %s91 = sphi 0, %s90
      %s107 = sphi 0, %s91
    $region4: #{tpu_custom_call.1} parent=1 // loop_header_branch
      %14 = sbr.rel (%p12) target = $region8
    $region5: #{tpu_custom_call.1} parent=1 // loop_body
      %s16 = ssub.s32 %s11, 1
      %s17 = ssub.s32 %s11, 2
      %s24 = sadd.s32 1, %s19
      %p25 = scmp.ge.s32.totalorder %s24, 1
      %s26 = scalar_select %p25, 0, %s24
      %s27 = sadd.s32 1, %s18
      %s28 = scalar_select %p25, %s27, %s18
      %p29 = scmp.ge.s32.totalorder %s28, 2
      %s30 = scalar_select %p29, 0, %s28
      %s31 = ssub.s32 %s18, %s30
      %p32 = scmp.eq.s32.totalorder %s31, 0
      %s34 = sadd.s32 %s33, 1
      %s35 = scalar_select %p32, %s33, %s34
      %p38 = pneg %p32
      %p39 = scmp.eq.s32.totalorder %s11, 1
      %p40 = por %p38, %p39
      %p41 = scmp.ne.s32.totalorder %s33, %s36
      %p42 = scmp.eq.s32.totalorder %s11, 0
      %p43 = por %p41, %p42
      %p44 = scmp.ne.s32.totalorder %s33, %s36
      %p45 = scmp.eq.s32.totalorder %s16, 1
      %p46 = por %p44, %p45
      %p47 = scmp.ne.s32.totalorder %s36, %s37
      %p48 = scmp.eq.s32.totalorder %s16, 0
      %p49 = por %p47, %p48
      %p50 = scmp.ne.s32.totalorder %s36, %s37
      %p51 = scmp.eq.s32.totalorder %s17, 1
      %p52 = por %p50, %p51
      %p54 = scmp.ne.s32.totalorder %s37, %s53
      %p55 = scmp.eq.s32.totalorder %s17, 0
      %p56 = por %p54, %p55
      %s57 = ssub.s32 %s19, %s26
      %p58 = scmp.eq.s32.totalorder %s57, 0
      %s60 = sadd.s32 %s59, 1
      %s61 = scalar_select %p58, %s59, %s60
      %p64 = pneg %p58
      %p65 = scmp.eq.s32.totalorder %s11, 1
      %p66 = por %p64, %p65
      %p67 = scmp.ne.s32.totalorder %s59, %s62
      %p68 = scmp.eq.s32.totalorder %s11, 0
      %p69 = por %p67, %p68
      %p70 = scmp.ne.s32.totalorder %s59, %s62
      %p71 = scmp.eq.s32.totalorder %s16, 1
      %p72 = por %p70, %p71
      %p73 = scmp.ne.s32.totalorder %s62, %s63
      %p74 = scmp.eq.s32.totalorder %s16, 0
      %p75 = por %p73, %p74
      %p76 = scmp.ne.s32.totalorder %s62, %s63
      %p77 = scmp.eq.s32.totalorder %s17, 1
      %p78 = por %p76, %p77
      %p80 = scmp.ne.s32.totalorder %s63, %s79
      %p81 = scmp.eq.s32.totalorder %s17, 0
      %p82 = por %p80, %p81
      %s83 = ssub.s32 %s18, %s30
      %s84 = ssub.s32 %s19, %s26
      %s85 = sor.u32 %s83, %s84
      %p86 = scmp.eq.s32.totalorder %s85, 0
      %s88 = sadd.s32 %s87, 1
      %s89 = scalar_select %p86, %s87, %s88
      %p92 = pneg %p86
      %p93 = scmp.eq.s32.totalorder %s11, 1
      %p94 = por %p92, %p93
      %p95 = scmp.ne.s32.totalorder %s87, %s90
      %p96 = scmp.eq.s32.totalorder %s11, 0
      %p97 = por %p95, %p96
      %p98 = scmp.ne.s32.totalorder %s87, %s90
      %p99 = scmp.eq.s32.totalorder %s16, 1
      %p100 = por %p98, %p99
      %p101 = scmp.ne.s32.totalorder %s90, %s91
      %p102 = scmp.eq.s32.totalorder %s16, 0
      %p103 = por %p101, %p102
      %p104 = scmp.ne.s32.totalorder %s90, %s91
      %p105 = scmp.eq.s32.totalorder %s17, 1
      %p106 = por %p104, %p105
      %p108 = scmp.ne.s32.totalorder %s91, %s107
      %p109 = scmp.eq.s32.totalorder %s17, 0
      %p110 = por %p108, %p109
      %p111 = scmp.le.s32.totalorder 1, %s11
      %p112 = scmp.lt.s32.totalorder %s11, 3
      %p113 = pnand %p111, %p112
      %p114 = pneg %p113
      // Predicated region
      $region9: #{tpu_custom_call.1} parent=5 // pred_check
        _
      $region10: #{tpu_custom_call.1} parent=5 // pred_check_branch
        %116 = sbr.rel (%p113) target = $region12
      $region11: #{tpu_custom_call.1} parent=5 // pred_region
        %s117 = ssub.s32 %s11, 1
        // Predicated region
        $region13: #{tpu_custom_call.1} parent=11 // pred_check
          %p118 = pneg %p75
        $region14: #{tpu_custom_call.1} parent=11 // pred_check_branch
          %120 = sbr.rel (%p118) target = $region16
        $region15: #{tpu_custom_call.1} parent=11 // pred_region
          %p121 = scmp.lt.s32.totalorder %s21, 0
          %s122 = scalar_select %p121, %s21, 0
          %s123 = smul.addr %s122, 4
          %s124 = scalar_lea.vmem %s1, %s123
        $region16: #{tpu_custom_call.1} parent=11 // pred_fallthru
          _
      $region12: #{tpu_custom_call.1} parent=5 // pred_fallthru
        _
      %p125 = scmp.lt.s32.totalorder %s11, 2
      // Predicated region
      $region17: #{tpu_custom_call.1} parent=5 // pred_check
        %p126 = pneg %p125
      $region18: #{tpu_custom_call.1} parent=5 // pred_check_branch
        %128 = sbr.rel (%p126) target = $region20
      $region19: #{tpu_custom_call.1} parent=5 // pred_region
        // Predicated region
        $region21: #{tpu_custom_call.1} parent=19 // pred_check
          %p129 = pneg %p43
        $region22: #{tpu_custom_call.1} parent=19 // pred_check_branch
          %131 = sbr.rel (%p129) target = $region24
        $region23: #{tpu_custom_call.1} parent=19 // pred_region
          %p132 = scmp.lt.s32.totalorder %s18, 1
          %s133 = scalar_select %p132, %s18, 1
          %s134 = smul.addr %s133, 8
          %s135 = smul.addr %s134, 2
          %s136 = scalar_lea.vmem %s0, %s135
        $region24: #{tpu_custom_call.1} parent=19 // pred_fallthru
          _
      $region20: #{tpu_custom_call.1} parent=5 // pred_fallthru
        _
      %p137 = scmp.le.s32.totalorder 1, %s11
      %p138 = scmp.lt.s32.totalorder %s11, 3
      %p139 = pnand %p137, %p138
      %p140 = pneg %p139
      // Predicated region
      $region25: #{tpu_custom_call.1} parent=5 // pred_check
        _
      $region26: #{tpu_custom_call.1} parent=5 // pred_check_branch
        %142 = sbr.rel (%p139) target = $region28
      $region27: #{tpu_custom_call.1} parent=5 // pred_region
        %s143 = ssub.s32 %s11, 1
        %p144 = scmp.lt.s32.totalorder %s20, 1
        %s145 = scalar_select %p144, %s20, 1
        %s146 = smul.addr %s145, 8
        %s147 = smul.addr %s146, 2
        %s148 = scalar_lea.vmem %s0, %s147
        %p149 = pneg %p49
        %p150 = pneg %p46
        %p151 = scmp.lt.s32.totalorder %s21, 0
        %s152 = scalar_select %p151, %s21, 0
        %s153 = smul.addr %s152, 4
        %s154 = scalar_lea.vmem %s1, %s153
        %p155 = pneg %p75
        %p156 = pneg %p72
        %p157 = pneg %p103
        %p158 = pneg %p100
        %s159 = sand.u32 %s90, 1
        %s160 = scalar_lea.sflag [#allocation3], %s159
        %s161 = sand.u32 %s90, 1
        %s162 = smul.addr %s161, 4
        %s163 = scalar_lea.vmem [#allocation2], %s162
        %p164 = scmp.lt.s32.totalorder %s20, 1
        %s165 = scalar_select %p164, %s20, 1
        %s166 = smul.addr %s165, 8
        %s167 = smul.addr %s166, 2
        %s168 = scalar_lea.vmem %s0, %s167
        %p169 = scmp.lt.s32.totalorder %s21, 0
        %s170 = scalar_select %p169, %s21, 0
        %s171 = smul.addr %s170, 4
        %s172 = scalar_lea.vmem %s1, %s171
        %v174 = vld [vmem:[%s168] sm:$0x3]
        %v175 = vld [vmem:[%s172] sm:$0xf]
        %s176 = scalar_lea.vmem %s168, 2
        %v177 = vld [vmem:[%s176] sm:$0x3]
        %s178 = scalar_lea.vmem %s172, 4
        %v179 = vld [vmem:[%s178] sm:$0xf]
        %vm180 = vcmask 31744
        %v182 = vsel %vm180, %v179, 0
        %vm184 = vcmask 1041408
        %v186 = vsel %vm184, %v177, 0
        %188 = vmatprep.subr.bf16.mxu0 0
        %189 = vmatpush1.bf16.msra.mxu0 0
        %190 = vmatprep.subr.bf16.mxu0 0
        %191 = vmatpush1.bf16.msra.mxu0 0
        %192 = vmatprep.subr.bf16.mxu0 0
        %193 = vmatpush1.bf16.msra.mxu0 0
        %194 = vmatprep.subr.bf16.mxu0 0
        %195 = vmatpush1.bf16.msra.mxu0 0
        %196 = vmatprep.subr.bf16.mxu0 0
        %197 = vmatpush1.bf16.msra.mxu0 0
        %198 = vmatprep.subr.bf16.mxu0 0
        %199 = vmatpush1.bf16.msra.mxu0 0
        %200 = vmatprep.subr.bf16.mxu0 0
        %201 = vmatpush1.bf16.msra.mxu0 0
        %202 = vmatprep.subr.bf16.mxu0 0
        %203 = vmatpush1.bf16.msra.mxu0 %v186
        %204 = vmatprep.subr.bf16.mxu0 0
        %205 = vmatpush2.bf16.msra.mxu0 0
        %206 = vmatprep.subr.bf16.mxu0 0
        %207 = vmatpush2.bf16.msra.mxu0 0
        %208 = vmatprep.subr.bf16.mxu0 0
        %209 = vmatpush2.bf16.msra.mxu0 0
        %210 = vmatprep.subr.bf16.mxu0 0
        %211 = vmatpush2.bf16.msra.mxu0 0
        %212 = vmatprep.subr.bf16.mxu0 0
        %213 = vmatpush2.bf16.msra.mxu0 0
        %214 = vmatprep.subr.bf16.mxu0 0
        %215 = vmatpush2.bf16.msra.mxu0 0
        %216 = vmatprep.subr.bf16.mxu0 0
        %217 = vmatpush2.bf16.msra.mxu0 0
        %218 = vmatprep.subr.bf16.mxu0 0
        %219 = vmatpush2.bf16.msra.mxu0 0
        %220 = vmatprep.mubr.bf16.mxu0 0
        %221 = vmatmul.mubr.bf16.gmra.mxu0 %v182
        %v222 = vpop.f32.mrf.mxu0
        %v223 = vadd.f32 0.0, %v222
        %v224 = vpop.f32.mrf.mxu0
        %v225 = vpop.f32.mrf.mxu0
        %v226 = vpop.f32.mrf.mxu0
        %227 = vdwg.mxu0
        %v229 = vsel %vm180, %v175, 0
        %v232 = vsel %vm184, %v174, 0
        %234 = vmatprep.subr.bf16.mxu0 0
        %235 = vmatpush1.bf16.msra.mxu0 0
        %236 = vmatprep.subr.bf16.mxu0 0
        %237 = vmatpush1.bf16.msra.mxu0 0
        %238 = vmatprep.subr.bf16.mxu0 0
        %239 = vmatpush1.bf16.msra.mxu0 0
        %240 = vmatprep.subr.bf16.mxu0 0
        %241 = vmatpush1.bf16.msra.mxu0 0
        %242 = vmatprep.subr.bf16.mxu0 0
        %243 = vmatpush1.bf16.msra.mxu0 0
        %244 = vmatprep.subr.bf16.mxu0 0
        %245 = vmatpush1.bf16.msra.mxu0 0
        %246 = vmatprep.subr.bf16.mxu0 0
        %247 = vmatpush1.bf16.msra.mxu0 0
        %248 = vmatprep.subr.bf16.mxu0 0
        %249 = vmatpush1.bf16.msra.mxu0 %v232
        %250 = vmatprep.subr.bf16.mxu0 0
        %251 = vmatpush2.bf16.msra.mxu0 0
        %252 = vmatprep.subr.bf16.mxu0 0
        %253 = vmatpush2.bf16.msra.mxu0 0
        %254 = vmatprep.subr.bf16.mxu0 0
        %255 = vmatpush2.bf16.msra.mxu0 0
        %256 = vmatprep.subr.bf16.mxu0 0
        %257 = vmatpush2.bf16.msra.mxu0 0
        %258 = vmatprep.subr.bf16.mxu0 0
        %259 = vmatpush2.bf16.msra.mxu0 0
        %260 = vmatprep.subr.bf16.mxu0 0
        %261 = vmatpush2.bf16.msra.mxu0 0
        %262 = vmatprep.subr.bf16.mxu0 0
        %263 = vmatpush2.bf16.msra.mxu0 0
        %264 = vmatprep.subr.bf16.mxu0 0
        %265 = vmatpush2.bf16.msra.mxu0 0
        %266 = vmatprep.mubr.bf16.mxu0 0
        %267 = vmatmul.mubr.bf16.gmra.mxu0 %v229
        %v268 = vpop.f32.mrf.mxu0
        %v269 = vadd.f32 %v223, %v268
        %v270 = vpop.f32.mrf.mxu0
        %v271 = vpop.f32.mrf.mxu0
        %v272 = vpop.f32.mrf.mxu0
        %273 = vdwg.mxu0
        %s274 = scalar_lea.vmem %s168, 4
        %v275 = vld [vmem:[%s274] sm:$0x3]
        %s276 = scalar_lea.vmem %s172, 8
        %v277 = vld [vmem:[%s276] sm:$0xf]
        %v279 = vsel %vm180, %v277, 0
        %v282 = vsel %vm184, %v275, 0
        %284 = vmatprep.subr.bf16.mxu0 0
        %285 = vmatpush1.bf16.msra.mxu0 0
        %286 = vmatprep.subr.bf16.mxu0 0
        %287 = vmatpush1.bf16.msra.mxu0 0
        %288 = vmatprep.subr.bf16.mxu0 0
        %289 = vmatpush1.bf16.msra.mxu0 0
        %290 = vmatprep.subr.bf16.mxu0 0
        %291 = vmatpush1.bf16.msra.mxu0 0
        %292 = vmatprep.subr.bf16.mxu0 0
        %293 = vmatpush1.bf16.msra.mxu0 0
        %294 = vmatprep.subr.bf16.mxu0 0
        %295 = vmatpush1.bf16.msra.mxu0 0
        %296 = vmatprep.subr.bf16.mxu0 0
        %297 = vmatpush1.bf16.msra.mxu0 0
        %298 = vmatprep.subr.bf16.mxu0 0
        %299 = vmatpush1.bf16.msra.mxu0 %v282
        %300 = vmatprep.subr.bf16.mxu0 0
        %301 = vmatpush2.bf16.msra.mxu0 0
        %302 = vmatprep.subr.bf16.mxu0 0
        %303 = vmatpush2.bf16.msra.mxu0 0
        %304 = vmatprep.subr.bf16.mxu0 0
        %305 = vmatpush2.bf16.msra.mxu0 0
        %306 = vmatprep.subr.bf16.mxu0 0
        %307 = vmatpush2.bf16.msra.mxu0 0
        %308 = vmatprep.subr.bf16.mxu0 0
        %309 = vmatpush2.bf16.msra.mxu0 0
        %310 = vmatprep.subr.bf16.mxu0 0
        %311 = vmatpush2.bf16.msra.mxu0 0
        %312 = vmatprep.subr.bf16.mxu0 0
        %313 = vmatpush2.bf16.msra.mxu0 0
        %314 = vmatprep.subr.bf16.mxu0 0
        %315 = vmatpush2.bf16.msra.mxu0 0
        %316 = vmatprep.mubr.bf16.mxu0 0
        %317 = vmatmul.mubr.bf16.gmra.mxu0 %v279
        %v318 = vpop.f32.mrf.mxu0
        %v319 = vadd.f32 0.0, %v318
        %v320 = vpop.f32.mrf.mxu0
        %v321 = vpop.f32.mrf.mxu0
        %v322 = vpop.f32.mrf.mxu0
        %323 = vdwg.mxu0
        %v324 = vadd.f32 %v269, %v319
        %s325 = scalar_lea.vmem %s168, 6
        %v326 = vld [vmem:[%s325] sm:$0x3]
        %s327 = scalar_lea.vmem %s172, 12
        %v328 = vld [vmem:[%s327] sm:$0xf]
        %v330 = vsel %vm180, %v328, 0
        %v333 = vsel %vm184, %v326, 0
        %335 = vmatprep.subr.bf16.mxu0 0
        %336 = vmatpush1.bf16.msra.mxu0 0
        %337 = vmatprep.subr.bf16.mxu0 0
        %338 = vmatpush1.bf16.msra.mxu0 0
        %339 = vmatprep.subr.bf16.mxu0 0
        %340 = vmatpush1.bf16.msra.mxu0 0
        %341 = vmatprep.subr.bf16.mxu0 0
        %342 = vmatpush1.bf16.msra.mxu0 0
        %343 = vmatprep.subr.bf16.mxu0 0
        %344 = vmatpush1.bf16.msra.mxu0 0
        %345 = vmatprep.subr.bf16.mxu0 0
        %346 = vmatpush1.bf16.msra.mxu0 0
        %347 = vmatprep.subr.bf16.mxu0 0
        %348 = vmatpush1.bf16.msra.mxu0 0
        %349 = vmatprep.subr.bf16.mxu0 0
        %350 = vmatpush1.bf16.msra.mxu0 %v333
        %351 = vmatprep.subr.bf16.mxu0 0
        %352 = vmatpush2.bf16.msra.mxu0 0
        %353 = vmatprep.subr.bf16.mxu0 0
        %354 = vmatpush2.bf16.msra.mxu0 0
        %355 = vmatprep.subr.bf16.mxu0 0
        %356 = vmatpush2.bf16.msra.mxu0 0
        %357 = vmatprep.subr.bf16.mxu0 0
        %358 = vmatpush2.bf16.msra.mxu0 0
        %359 = vmatprep.subr.bf16.mxu0 0
        %360 = vmatpush2.bf16.msra.mxu0 0
        %361 = vmatprep.subr.bf16.mxu0 0
        %362 = vmatpush2.bf16.msra.mxu0 0
        %363 = vmatprep.subr.bf16.mxu0 0
        %364 = vmatpush2.bf16.msra.mxu0 0
        %365 = vmatprep.subr.bf16.mxu0 0
        %366 = vmatpush2.bf16.msra.mxu0 0
        %367 = vmatprep.mubr.bf16.mxu0 0
        %368 = vmatmul.mubr.bf16.gmra.mxu0 %v330
        %v369 = vpop.f32.mrf.mxu0
        %v370 = vadd.f32 0.0, %v369
        %v371 = vpop.f32.mrf.mxu0
        %v372 = vpop.f32.mrf.mxu0
        %v373 = vpop.f32.mrf.mxu0
        %374 = vdwg.mxu0
        %v375 = vadd.f32 %v324, %v370
        %s376 = scalar_lea.vmem %s168, 8
        %v377 = vld [vmem:[%s376] sm:$0x3]
        %s378 = scalar_lea.vmem %s172, 16
        %v379 = vld [vmem:[%s378] sm:$0xf]
        %v381 = vsel %vm180, %v379, 0
        %v384 = vsel %vm184, %v377, 0
        %386 = vmatprep.subr.bf16.mxu0 0
        %387 = vmatpush1.bf16.msra.mxu0 0
        %388 = vmatprep.subr.bf16.mxu0 0
        %389 = vmatpush1.bf16.msra.mxu0 0
        %390 = vmatprep.subr.bf16.mxu0 0
        %391 = vmatpush1.bf16.msra.mxu0 0
        %392 = vmatprep.subr.bf16.mxu0 0
        %393 = vmatpush1.bf16.msra.mxu0 0
        %394 = vmatprep.subr.bf16.mxu0 0
        %395 = vmatpush1.bf16.msra.mxu0 0
        %396 = vmatprep.subr.bf16.mxu0 0
        %397 = vmatpush1.bf16.msra.mxu0 0
        %398 = vmatprep.subr.bf16.mxu0 0
        %399 = vmatpush1.bf16.msra.mxu0 0
        %400 = vmatprep.subr.bf16.mxu0 0
        %401 = vmatpush1.bf16.msra.mxu0 %v384
        %402 = vmatprep.subr.bf16.mxu0 0
        %403 = vmatpush2.bf16.msra.mxu0 0
        %404 = vmatprep.subr.bf16.mxu0 0
        %405 = vmatpush2.bf16.msra.mxu0 0
        %406 = vmatprep.subr.bf16.mxu0 0
        %407 = vmatpush2.bf16.msra.mxu0 0
        %408 = vmatprep.subr.bf16.mxu0 0
        %409 = vmatpush2.bf16.msra.mxu0 0
        %410 = vmatprep.subr.bf16.mxu0 0
        %411 = vmatpush2.bf16.msra.mxu0 0
        %412 = vmatprep.subr.bf16.mxu0 0
        %413 = vmatpush2.bf16.msra.mxu0 0
        %414 = vmatprep.subr.bf16.mxu0 0
        %415 = vmatpush2.bf16.msra.mxu0 0
        %416 = vmatprep.subr.bf16.mxu0 0
        %417 = vmatpush2.bf16.msra.mxu0 0
        %418 = vmatprep.mubr.bf16.mxu0 0
        %419 = vmatmul.mubr.bf16.gmra.mxu0 %v381
        %v420 = vpop.f32.mrf.mxu0
        %v421 = vadd.f32 0.0, %v420
        %v422 = vpop.f32.mrf.mxu0
        %v423 = vpop.f32.mrf.mxu0
        %v424 = vpop.f32.mrf.mxu0
        %425 = vdwg.mxu0
        %v426 = vadd.f32 %v375, %v421
        %s427 = scalar_lea.vmem %s168, 10
        %v428 = vld [vmem:[%s427] sm:$0x3]
        %s429 = scalar_lea.vmem %s172, 20
        %v430 = vld [vmem:[%s429] sm:$0xf]
        %v432 = vsel %vm180, %v430, 0
        %v435 = vsel %vm184, %v428, 0
        %437 = vmatprep.subr.bf16.mxu0 0
        %438 = vmatpush1.bf16.msra.mxu0 0
        %439 = vmatprep.subr.bf16.mxu0 0
        %440 = vmatpush1.bf16.msra.mxu0 0
        %441 = vmatprep.subr.bf16.mxu0 0
        %442 = vmatpush1.bf16.msra.mxu0 0
        %443 = vmatprep.subr.bf16.mxu0 0
        %444 = vmatpush1.bf16.msra.mxu0 0
        %445 = vmatprep.subr.bf16.mxu0 0
        %446 = vmatpush1.bf16.msra.mxu0 0
        %447 = vmatprep.subr.bf16.mxu0 0
        %448 = vmatpush1.bf16.msra.mxu0 0
        %449 = vmatprep.subr.bf16.mxu0 0
        %450 = vmatpush1.bf16.msra.mxu0 0
        %451 = vmatprep.subr.bf16.mxu0 0
        %452 = vmatpush1.bf16.msra.mxu0 %v435
        %453 = vmatprep.subr.bf16.mxu0 0
        %454 = vmatpush2.bf16.msra.mxu0 0
        %455 = vmatprep.subr.bf16.mxu0 0
        %456 = vmatpush2.bf16.msra.mxu0 0
        %457 = vmatprep.subr.bf16.mxu0 0
        %458 = vmatpush2.bf16.msra.mxu0 0
        %459 = vmatprep.subr.bf16.mxu0 0
        %460 = vmatpush2.bf16.msra.mxu0 0
        %461 = vmatprep.subr.bf16.mxu0 0
        %462 = vmatpush2.bf16.msra.mxu0 0
        %463 = vmatprep.subr.bf16.mxu0 0
        %464 = vmatpush2.bf16.msra.mxu0 0
        %465 = vmatprep.subr.bf16.mxu0 0
        %466 = vmatpush2.bf16.msra.mxu0 0
        %467 = vmatprep.subr.bf16.mxu0 0
        %468 = vmatpush2.bf16.msra.mxu0 0
        %469 = vmatprep.mubr.bf16.mxu0 0
        %470 = vmatmul.mubr.bf16.gmra.mxu0 %v432
        %v471 = vpop.f32.mrf.mxu0
        %v472 = vadd.f32 0.0, %v471
        %v473 = vpop.f32.mrf.mxu0
        %v474 = vpop.f32.mrf.mxu0
        %v475 = vpop.f32.mrf.mxu0
        %476 = vdwg.mxu0
        %v477 = vadd.f32 %v426, %v472
        %s478 = scalar_lea.vmem %s168, 12
        %v479 = vld [vmem:[%s478] sm:$0x3]
        %s480 = scalar_lea.vmem %s172, 24
        %v481 = vld [vmem:[%s480] sm:$0xf]
        %v483 = vsel %vm180, %v481, 0
        %v486 = vsel %vm184, %v479, 0
        %488 = vmatprep.subr.bf16.mxu0 0
        %489 = vmatpush1.bf16.msra.mxu0 0
        %490 = vmatprep.subr.bf16.mxu0 0
        %491 = vmatpush1.bf16.msra.mxu0 0
        %492 = vmatprep.subr.bf16.mxu0 0
        %493 = vmatpush1.bf16.msra.mxu0 0
        %494 = vmatprep.subr.bf16.mxu0 0
        %495 = vmatpush1.bf16.msra.mxu0 0
        %496 = vmatprep.subr.bf16.mxu0 0
        %497 = vmatpush1.bf16.msra.mxu0 0
        %498 = vmatprep.subr.bf16.mxu0 0
        %499 = vmatpush1.bf16.msra.mxu0 0
        %500 = vmatprep.subr.bf16.mxu0 0
        %501 = vmatpush1.bf16.msra.mxu0 0
        %502 = vmatprep.subr.bf16.mxu0 0
        %503 = vmatpush1.bf16.msra.mxu0 %v486
        %504 = vmatprep.subr.bf16.mxu0 0
        %505 = vmatpush2.bf16.msra.mxu0 0
        %506 = vmatprep.subr.bf16.mxu0 0
        %507 = vmatpush2.bf16.msra.mxu0 0
        %508 = vmatprep.subr.bf16.mxu0 0
        %509 = vmatpush2.bf16.msra.mxu0 0
        %510 = vmatprep.subr.bf16.mxu0 0
        %511 = vmatpush2.bf16.msra.mxu0 0
        %512 = vmatprep.subr.bf16.mxu0 0
        %513 = vmatpush2.bf16.msra.mxu0 0
        %514 = vmatprep.subr.bf16.mxu0 0
        %515 = vmatpush2.bf16.msra.mxu0 0
        %516 = vmatprep.subr.bf16.mxu0 0
        %517 = vmatpush2.bf16.msra.mxu0 0
        %518 = vmatprep.subr.bf16.mxu0 0
        %519 = vmatpush2.bf16.msra.mxu0 0
        %520 = vmatprep.mubr.bf16.mxu0 0
        %521 = vmatmul.mubr.bf16.gmra.mxu0 %v483
        %v522 = vpop.f32.mrf.mxu0
        %v523 = vadd.f32 0.0, %v522
        %v524 = vpop.f32.mrf.mxu0
        %v525 = vpop.f32.mrf.mxu0
        %v526 = vpop.f32.mrf.mxu0
        %527 = vdwg.mxu0
        %v528 = vadd.f32 %v477, %v523
        %s529 = scalar_lea.vmem %s168, 14
        %v530 = vld [vmem:[%s529] sm:$0x3]
        %s531 = scalar_lea.vmem %s172, 28
        %v532 = vld [vmem:[%s531] sm:$0xf]
        %v534 = vsel %vm180, %v532, 0
        %v537 = vsel %vm184, %v530, 0
        %539 = vmatprep.subr.bf16.mxu0 0
        %540 = vmatpush1.bf16.msra.mxu0 0
        %541 = vmatprep.subr.bf16.mxu0 0
        %542 = vmatpush1.bf16.msra.mxu0 0
        %543 = vmatprep.subr.bf16.mxu0 0
        %544 = vmatpush1.bf16.msra.mxu0 0
        %545 = vmatprep.subr.bf16.mxu0 0
        %546 = vmatpush1.bf16.msra.mxu0 0
        %547 = vmatprep.subr.bf16.mxu0 0
        %548 = vmatpush1.bf16.msra.mxu0 0
        %549 = vmatprep.subr.bf16.mxu0 0
        %550 = vmatpush1.bf16.msra.mxu0 0
        %551 = vmatprep.subr.bf16.mxu0 0
        %552 = vmatpush1.bf16.msra.mxu0 0
        %553 = vmatprep.subr.bf16.mxu0 0
        %554 = vmatpush1.bf16.msra.mxu0 %v537
        %555 = vmatprep.subr.bf16.mxu0 0
        %556 = vmatpush2.bf16.msra.mxu0 0
        %557 = vmatprep.subr.bf16.mxu0 0
        %558 = vmatpush2.bf16.msra.mxu0 0
        %559 = vmatprep.subr.bf16.mxu0 0
        %560 = vmatpush2.bf16.msra.mxu0 0
        %561 = vmatprep.subr.bf16.mxu0 0
        %562 = vmatpush2.bf16.msra.mxu0 0
        %563 = vmatprep.subr.bf16.mxu0 0
        %564 = vmatpush2.bf16.msra.mxu0 0
        %565 = vmatprep.subr.bf16.mxu0 0
        %566 = vmatpush2.bf16.msra.mxu0 0
        %567 = vmatprep.subr.bf16.mxu0 0
        %568 = vmatpush2.bf16.msra.mxu0 0
        %569 = vmatprep.subr.bf16.mxu0 0
        %570 = vmatpush2.bf16.msra.mxu0 0
        %571 = vmatprep.mubr.bf16.mxu0 0
        %572 = vmatmul.mubr.bf16.gmra.mxu0 %v534
        %v573 = vpop.f32.mrf.mxu0
        %v574 = vadd.f32 0.0, %v573
        %v575 = vpop.f32.mrf.mxu0
        %v576 = vpop.f32.mrf.mxu0
        %v577 = vpop.f32.mrf.mxu0
        %578 = vdwg.mxu0
        %v579 = vadd.f32 %v528, %v574
        %s580 = scalar_lea.vmem %s172, 32
        %v581 = vld [vmem:[%s580] sm:$0xf]
        %v584 = vunpack.c.l.s4 1983009808
        %v585 = vunpack.c.0.s8 %v584
        %v586 = vlaneseq
        %v587 = vshrl.u32 %v586, 7
        %v588 = vsub.s32 %v585, %v587
        %v589 = vrot.slane %v174, %v588
        %590 = vrot.lane.b32.xlu0 %v589, 120
        %v591 = vpop.permute.xlu0 %590
        %v593 = vsel %vm180, %v581, 0
        %v596 = vsel %vm184, %v591, 0
        %598 = vmatprep.subr.bf16.mxu0 0
        %599 = vmatpush1.bf16.msra.mxu0 0
        %600 = vmatprep.subr.bf16.mxu0 0
        %601 = vmatpush1.bf16.msra.mxu0 0
        %602 = vmatprep.subr.bf16.mxu0 0
        %603 = vmatpush1.bf16.msra.mxu0 0
        %604 = vmatprep.subr.bf16.mxu0 0
        %605 = vmatpush1.bf16.msra.mxu0 0
        %606 = vmatprep.subr.bf16.mxu0 0
        %607 = vmatpush1.bf16.msra.mxu0 0
        %608 = vmatprep.subr.bf16.mxu0 0
        %609 = vmatpush1.bf16.msra.mxu0 0
        %610 = vmatprep.subr.bf16.mxu0 0
        %611 = vmatpush1.bf16.msra.mxu0 0
        %612 = vmatprep.subr.bf16.mxu0 0
        %613 = vmatpush1.bf16.msra.mxu0 %v596
        %614 = vmatprep.subr.bf16.mxu0 0
        %615 = vmatpush2.bf16.msra.mxu0 0
        %616 = vmatprep.subr.bf16.mxu0 0
        %617 = vmatpush2.bf16.msra.mxu0 0
        %618 = vmatprep.subr.bf16.mxu0 0
        %619 = vmatpush2.bf16.msra.mxu0 0
        %620 = vmatprep.subr.bf16.mxu0 0
        %621 = vmatpush2.bf16.msra.mxu0 0
        %622 = vmatprep.subr.bf16.mxu0 0
        %623 = vmatpush2.bf16.msra.mxu0 0
        %624 = vmatprep.subr.bf16.mxu0 0
        %625 = vmatpush2.bf16.msra.mxu0 0
        %626 = vmatprep.subr.bf16.mxu0 0
        %627 = vmatpush2.bf16.msra.mxu0 0
        %628 = vmatprep.subr.bf16.mxu0 0
        %629 = vmatpush2.bf16.msra.mxu0 0
        %630 = vmatprep.mubr.bf16.mxu0 0
        %631 = vmatmul.mubr.bf16.gmra.mxu0 %v593
        %v632 = vpop.f32.mrf.mxu0
        %v633 = vadd.f32 0.0, %v632
        %v634 = vpop.f32.mrf.mxu0
        %v635 = vpop.f32.mrf.mxu0
        %v636 = vpop.f32.mrf.mxu0
        %637 = vdwg.mxu0
        %v638 = vadd.f32 %v579, %v633
        %v639 = vld [vmem:[%s176] sm:$0x3]
        %s640 = scalar_lea.vmem %s172, 36
        %v641 = vld [vmem:[%s640] sm:$0xf]
        %v644 = vunpack.c.l.s4 1983009808
        %v645 = vunpack.c.0.s8 %v644
        %v646 = vlaneseq
        %v647 = vshrl.u32 %v646, 7
        %v648 = vsub.s32 %v645, %v647
        %v649 = vrot.slane %v639, %v648
        %650 = vrot.lane.b32.xlu0 %v649, 120
        %v651 = vpop.permute.xlu0 %650
        %v653 = vsel %vm180, %v641, 0
        %v656 = vsel %vm184, %v651, 0
        %658 = vmatprep.subr.bf16.mxu0 0
        %659 = vmatpush1.bf16.msra.mxu0 0
        %660 = vmatprep.subr.bf16.mxu0 0
        %661 = vmatpush1.bf16.msra.mxu0 0
        %662 = vmatprep.subr.bf16.mxu0 0
        %663 = vmatpush1.bf16.msra.mxu0 0
        %664 = vmatprep.subr.bf16.mxu0 0
        %665 = vmatpush1.bf16.msra.mxu0 0
        %666 = vmatprep.subr.bf16.mxu0 0
        %667 = vmatpush1.bf16.msra.mxu0 0
        %668 = vmatprep.subr.bf16.mxu0 0
        %669 = vmatpush1.bf16.msra.mxu0 0
        %670 = vmatprep.subr.bf16.mxu0 0
        %671 = vmatpush1.bf16.msra.mxu0 0
        %672 = vmatprep.subr.bf16.mxu0 0
        %673 = vmatpush1.bf16.msra.mxu0 %v656
        %674 = vmatprep.subr.bf16.mxu0 0
        %675 = vmatpush2.bf16.msra.mxu0 0
        %676 = vmatprep.subr.bf16.mxu0 0
        %677 = vmatpush2.bf16.msra.mxu0 0
        %678 = vmatprep.subr.bf16.mxu0 0
        %679 = vmatpush2.bf16.msra.mxu0 0
        %680 = vmatprep.subr.bf16.mxu0 0
        %681 = vmatpush2.bf16.msra.mxu0 0
        %682 = vmatprep.subr.bf16.mxu0 0
        %683 = vmatpush2.bf16.msra.mxu0 0
        %684 = vmatprep.subr.bf16.mxu0 0
        %685 = vmatpush2.bf16.msra.mxu0 0
        %686 = vmatprep.subr.bf16.mxu0 0
        %687 = vmatpush2.bf16.msra.mxu0 0
        %688 = vmatprep.subr.bf16.mxu0 0
        %689 = vmatpush2.bf16.msra.mxu0 0
        %690 = vmatprep.mubr.bf16.mxu0 0
        %691 = vmatmul.mubr.bf16.gmra.mxu0 %v653
        %v692 = vpop.f32.mrf.mxu0
        %v693 = vadd.f32 0.0, %v692
        %v694 = vpop.f32.mrf.mxu0
        %v695 = vpop.f32.mrf.mxu0
        %v696 = vpop.f32.mrf.mxu0
        %697 = vdwg.mxu0
        %v698 = vadd.f32 %v638, %v693
        %v699 = vld [vmem:[%s274] sm:$0x3]
        %s700 = scalar_lea.vmem %s172, 40
        %v701 = vld [vmem:[%s700] sm:$0xf]
        %v704 = vunpack.c.l.s4 1983009808
        %v705 = vunpack.c.0.s8 %v704
        %v706 = vlaneseq
        %v707 = vshrl.u32 %v706, 7
        %v708 = vsub.s32 %v705, %v707
        %v709 = vrot.slane %v699, %v708
        %710 = vrot.lane.b32.xlu0 %v709, 120
        %v711 = vpop.permute.xlu0 %710
        %v713 = vsel %vm180, %v701, 0
        %v716 = vsel %vm184, %v711, 0
        %718 = vmatprep.subr.bf16.mxu0 0
        %719 = vmatpush1.bf16.msra.mxu0 0
        %720 = vmatprep.subr.bf16.mxu0 0
        %721 = vmatpush1.bf16.msra.mxu0 0
        %722 = vmatprep.subr.bf16.mxu0 0
        %723 = vmatpush1.bf16.msra.mxu0 0
        %724 = vmatprep.subr.bf16.mxu0 0
        %725 = vmatpush1.bf16.msra.mxu0 0
        %726 = vmatprep.subr.bf16.mxu0 0
        %727 = vmatpush1.bf16.msra.mxu0 0
        %728 = vmatprep.subr.bf16.mxu0 0
        %729 = vmatpush1.bf16.msra.mxu0 0
        %730 = vmatprep.subr.bf16.mxu0 0
        %731 = vmatpush1.bf16.msra.mxu0 0
        %732 = vmatprep.subr.bf16.mxu0 0
        %733 = vmatpush1.bf16.msra.mxu0 %v716
        %734 = vmatprep.subr.bf16.mxu0 0
        %735 = vmatpush2.bf16.msra.mxu0 0
        %736 = vmatprep.subr.bf16.mxu0 0
        %737 = vmatpush2.bf16.msra.mxu0 0
        %738 = vmatprep.subr.bf16.mxu0 0
        %739 = vmatpush2.bf16.msra.mxu0 0
        %740 = vmatprep.subr.bf16.mxu0 0
        %741 = vmatpush2.bf16.msra.mxu0 0
        %742 = vmatprep.subr.bf16.mxu0 0
        %743 = vmatpush2.bf16.msra.mxu0 0
        %744 = vmatprep.subr.bf16.mxu0 0
        %745 = vmatpush2.bf16.msra.mxu0 0
        %746 = vmatprep.subr.bf16.mxu0 0
        %747 = vmatpush2.bf16.msra.mxu0 0
        %748 = vmatprep.subr.bf16.mxu0 0
        %749 = vmatpush2.bf16.msra.mxu0 0
        %750 = vmatprep.mubr.bf16.mxu0 0
        %751 = vmatmul.mubr.bf16.gmra.mxu0 %v713
        %v752 = vpop.f32.mrf.mxu0
        %v753 = vadd.f32 0.0, %v752
        %v754 = vpop.f32.mrf.mxu0
        %v755 = vpop.f32.mrf.mxu0
        %v756 = vpop.f32.mrf.mxu0
        %757 = vdwg.mxu0
        %v758 = vadd.f32 %v698, %v753
        %v759 = vld [vmem:[%s325] sm:$0x3]
        %s760 = scalar_lea.vmem %s172, 44
        %v761 = vld [vmem:[%s760] sm:$0xf]
        %v764 = vunpack.c.l.s4 1983009808
        %v765 = vunpack.c.0.s8 %v764
        %v766 = vlaneseq
        %v767 = vshrl.u32 %v766, 7
        %v768 = vsub.s32 %v765, %v767
        %v769 = vrot.slane %v759, %v768
        %770 = vrot.lane.b32.xlu0 %v769, 120
        %v771 = vpop.permute.xlu0 %770
        %v773 = vsel %vm180, %v761, 0
        %v776 = vsel %vm184, %v771, 0
        %778 = vmatprep.subr.bf16.mxu0 0
        %779 = vmatpush1.bf16.msra.mxu0 0
        %780 = vmatprep.subr.bf16.mxu0 0
        %781 = vmatpush1.bf16.msra.mxu0 0
        %782 = vmatprep.subr.bf16.mxu0 0
        %783 = vmatpush1.bf16.msra.mxu0 0
        %784 = vmatprep.subr.bf16.mxu0 0
        %785 = vmatpush1.bf16.msra.mxu0 0
        %786 = vmatprep.subr.bf16.mxu0 0
        %787 = vmatpush1.bf16.msra.mxu0 0
        %788 = vmatprep.subr.bf16.mxu0 0
        %789 = vmatpush1.bf16.msra.mxu0 0
        %790 = vmatprep.subr.bf16.mxu0 0
        %791 = vmatpush1.bf16.msra.mxu0 0
        %792 = vmatprep.subr.bf16.mxu0 0
        %793 = vmatpush1.bf16.msra.mxu0 %v776
        %794 = vmatprep.subr.bf16.mxu0 0
        %795 = vmatpush2.bf16.msra.mxu0 0
        %796 = vmatprep.subr.bf16.mxu0 0
        %797 = vmatpush2.bf16.msra.mxu0 0
        %798 = vmatprep.subr.bf16.mxu0 0
        %799 = vmatpush2.bf16.msra.mxu0 0
        %800 = vmatprep.subr.bf16.mxu0 0
        %801 = vmatpush2.bf16.msra.mxu0 0
        %802 = vmatprep.subr.bf16.mxu0 0
        %803 = vmatpush2.bf16.msra.mxu0 0
        %804 = vmatprep.subr.bf16.mxu0 0
        %805 = vmatpush2.bf16.msra.mxu0 0
        %806 = vmatprep.subr.bf16.mxu0 0
        %807 = vmatpush2.bf16.msra.mxu0 0
        %808 = vmatprep.subr.bf16.mxu0 0
        %809 = vmatpush2.bf16.msra.mxu0 0
        %810 = vmatprep.mubr.bf16.mxu0 0
        %811 = vmatmul.mubr.bf16.gmra.mxu0 %v773
        %v812 = vpop.f32.mrf.mxu0
        %v813 = vadd.f32 0.0, %v812
        %v814 = vpop.f32.mrf.mxu0
        %v815 = vpop.f32.mrf.mxu0
        %v816 = vpop.f32.mrf.mxu0
        %817 = vdwg.mxu0
        %v818 = vadd.f32 %v758, %v813
        %v819 = vld [vmem:[%s376] sm:$0x3]
        %s820 = scalar_lea.vmem %s172, 48
        %v821 = vld [vmem:[%s820] sm:$0xf]
        %v824 = vunpack.c.l.s4 1983009808
        %v825 = vunpack.c.0.s8 %v824
        %v826 = vlaneseq
        %v827 = vshrl.u32 %v826, 7
        %v828 = vsub.s32 %v825, %v827
        %v829 = vrot.slane %v819, %v828
        %830 = vrot.lane.b32.xlu0 %v829, 120
        %v831 = vpop.permute.xlu0 %830
        %v833 = vsel %vm180, %v821, 0
        %v836 = vsel %vm184, %v831, 0
        %838 = vmatprep.subr.bf16.mxu0 0
        %839 = vmatpush1.bf16.msra.mxu0 0
        %840 = vmatprep.subr.bf16.mxu0 0
        %841 = vmatpush1.bf16.msra.mxu0 0
        %842 = vmatprep.subr.bf16.mxu0 0
        %843 = vmatpush1.bf16.msra.mxu0 0
        %844 = vmatprep.subr.bf16.mxu0 0
        %845 = vmatpush1.bf16.msra.mxu0 0
        %846 = vmatprep.subr.bf16.mxu0 0
        %847 = vmatpush1.bf16.msra.mxu0 0
        %848 = vmatprep.subr.bf16.mxu0 0
        %849 = vmatpush1.bf16.msra.mxu0 0
        %850 = vmatprep.subr.bf16.mxu0 0
        %851 = vmatpush1.bf16.msra.mxu0 0
        %852 = vmatprep.subr.bf16.mxu0 0
        %853 = vmatpush1.bf16.msra.mxu0 %v836
        %854 = vmatprep.subr.bf16.mxu0 0
        %855 = vmatpush2.bf16.msra.mxu0 0
        %856 = vmatprep.subr.bf16.mxu0 0
        %857 = vmatpush2.bf16.msra.mxu0 0
        %858 = vmatprep.subr.bf16.mxu0 0
        %859 = vmatpush2.bf16.msra.mxu0 0
        %860 = vmatprep.subr.bf16.mxu0 0
        %861 = vmatpush2.bf16.msra.mxu0 0
        %862 = vmatprep.subr.bf16.mxu0 0
        %863 = vmatpush2.bf16.msra.mxu0 0
        %864 = vmatprep.subr.bf16.mxu0 0
        %865 = vmatpush2.bf16.msra.mxu0 0
        %866 = vmatprep.subr.bf16.mxu0 0
        %867 = vmatpush2.bf16.msra.mxu0 0
        %868 = vmatprep.subr.bf16.mxu0 0
        %869 = vmatpush2.bf16.msra.mxu0 0
        %870 = vmatprep.mubr.bf16.mxu0 0
        %871 = vmatmul.mubr.bf16.gmra.mxu0 %v833
        %v872 = vpop.f32.mrf.mxu0
        %v873 = vadd.f32 0.0, %v872
        %v874 = vpop.f32.mrf.mxu0
        %v875 = vpop.f32.mrf.mxu0
        %v876 = vpop.f32.mrf.mxu0
        %877 = vdwg.mxu0
        %v878 = vadd.f32 %v818, %v873
        %v879 = vld [vmem:[%s427] sm:$0x3]
        %s880 = scalar_lea.vmem %s172, 52
        %v881 = vld [vmem:[%s880] sm:$0xf]
        %v884 = vunpack.c.l.s4 1983009808
        %v885 = vunpack.c.0.s8 %v884
        %v886 = vlaneseq
        %v887 = vshrl.u32 %v886, 7
        %v888 = vsub.s32 %v885, %v887
        %v889 = vrot.slane %v879, %v888
        %890 = vrot.lane.b32.xlu0 %v889, 120
        %v891 = vpop.permute.xlu0 %890
        %v893 = vsel %vm180, %v881, 0
        %v896 = vsel %vm184, %v891, 0
        %898 = vmatprep.subr.bf16.mxu0 0
        %899 = vmatpush1.bf16.msra.mxu0 0
        %900 = vmatprep.subr.bf16.mxu0 0
        %901 = vmatpush1.bf16.msra.mxu0 0
        %902 = vmatprep.subr.bf16.mxu0 0
        %903 = vmatpush1.bf16.msra.mxu0 0
        %904 = vmatprep.subr.bf16.mxu0 0
        %905 = vmatpush1.bf16.msra.mxu0 0
        %906 = vmatprep.subr.bf16.mxu0 0
        %907 = vmatpush1.bf16.msra.mxu0 0
        %908 = vmatprep.subr.bf16.mxu0 0
        %909 = vmatpush1.bf16.msra.mxu0 0
        %910 = vmatprep.subr.bf16.mxu0 0
        %911 = vmatpush1.bf16.msra.mxu0 0
        %912 = vmatprep.subr.bf16.mxu0 0
        %913 = vmatpush1.bf16.msra.mxu0 %v896
        %914 = vmatprep.subr.bf16.mxu0 0
        %915 = vmatpush2.bf16.msra.mxu0 0
        %916 = vmatprep.subr.bf16.mxu0 0
        %917 = vmatpush2.bf16.msra.mxu0 0
        %918 = vmatprep.subr.bf16.mxu0 0
        %919 = vmatpush2.bf16.msra.mxu0 0
        %920 = vmatprep.subr.bf16.mxu0 0
        %921 = vmatpush2.bf16.msra.mxu0 0
        %922 = vmatprep.subr.bf16.mxu0 0
        %923 = vmatpush2.bf16.msra.mxu0 0
        %924 = vmatprep.subr.bf16.mxu0 0
        %925 = vmatpush2.bf16.msra.mxu0 0
        %926 = vmatprep.subr.bf16.mxu0 0
        %927 = vmatpush2.bf16.msra.mxu0 0
        %928 = vmatprep.subr.bf16.mxu0 0
        %929 = vmatpush2.bf16.msra.mxu0 0
        %930 = vmatprep.mubr.bf16.mxu0 0
        %931 = vmatmul.mubr.bf16.gmra.mxu0 %v893
        %v932 = vpop.f32.mrf.mxu0
        %v933 = vadd.f32 0.0, %v932
        %v934 = vpop.f32.mrf.mxu0
        %v935 = vpop.f32.mrf.mxu0
        %v936 = vpop.f32.mrf.mxu0
        %937 = vdwg.mxu0
        %v938 = vadd.f32 %v878, %v933
        %v939 = vld [vmem:[%s478] sm:$0x3]
        %s940 = scalar_lea.vmem %s172, 56
        %v941 = vld [vmem:[%s940] sm:$0xf]
        %v944 = vunpack.c.l.s4 1983009808
        %v945 = vunpack.c.0.s8 %v944
        %v946 = vlaneseq
        %v947 = vshrl.u32 %v946, 7
        %v948 = vsub.s32 %v945, %v947
        %v949 = vrot.slane %v939, %v948
        %950 = vrot.lane.b32.xlu0 %v949, 120
        %v951 = vpop.permute.xlu0 %950
        %v953 = vsel %vm180, %v941, 0
        %v956 = vsel %vm184, %v951, 0
        %958 = vmatprep.subr.bf16.mxu0 0
        %959 = vmatpush1.bf16.msra.mxu0 0
        %960 = vmatprep.subr.bf16.mxu0 0
        %961 = vmatpush1.bf16.msra.mxu0 0
        %962 = vmatprep.subr.bf16.mxu0 0
        %963 = vmatpush1.bf16.msra.mxu0 0
        %964 = vmatprep.subr.bf16.mxu0 0
        %965 = vmatpush1.bf16.msra.mxu0 0
        %966 = vmatprep.subr.bf16.mxu0 0
        %967 = vmatpush1.bf16.msra.mxu0 0
        %968 = vmatprep.subr.bf16.mxu0 0
        %969 = vmatpush1.bf16.msra.mxu0 0
        %970 = vmatprep.subr.bf16.mxu0 0
        %971 = vmatpush1.bf16.msra.mxu0 0
        %972 = vmatprep.subr.bf16.mxu0 0
        %973 = vmatpush1.bf16.msra.mxu0 %v956
        %974 = vmatprep.subr.bf16.mxu0 0
        %975 = vmatpush2.bf16.msra.mxu0 0
        %976 = vmatprep.subr.bf16.mxu0 0
        %977 = vmatpush2.bf16.msra.mxu0 0
        %978 = vmatprep.subr.bf16.mxu0 0
        %979 = vmatpush2.bf16.msra.mxu0 0
        %980 = vmatprep.subr.bf16.mxu0 0
        %981 = vmatpush2.bf16.msra.mxu0 0
        %982 = vmatprep.subr.bf16.mxu0 0
        %983 = vmatpush2.bf16.msra.mxu0 0
        %984 = vmatprep.subr.bf16.mxu0 0
        %985 = vmatpush2.bf16.msra.mxu0 0
        %986 = vmatprep.subr.bf16.mxu0 0
        %987 = vmatpush2.bf16.msra.mxu0 0
        %988 = vmatprep.subr.bf16.mxu0 0
        %989 = vmatpush2.bf16.msra.mxu0 0
        %990 = vmatprep.mubr.bf16.mxu0 0
        %991 = vmatmul.mubr.bf16.gmra.mxu0 %v953
        %v992 = vpop.f32.mrf.mxu0
        %v993 = vadd.f32 0.0, %v992
        %v994 = vpop.f32.mrf.mxu0
        %v995 = vpop.f32.mrf.mxu0
        %v996 = vpop.f32.mrf.mxu0
        %997 = vdwg.mxu0
        %v998 = vadd.f32 %v938, %v993
        %v999 = vld [vmem:[%s529] sm:$0x3]
        %s1000 = scalar_lea.vmem %s172, 60
        %v1001 = vld [vmem:[%s1000] sm:$0xf]
        %v1004 = vunpack.c.l.s4 1983009808
        %v1005 = vunpack.c.0.s8 %v1004
        %v1006 = vlaneseq
        %v1007 = vshrl.u32 %v1006, 7
        %v1008 = vsub.s32 %v1005, %v1007
        %v1009 = vrot.slane %v999, %v1008
        %1010 = vrot.lane.b32.xlu0 %v1009, 120
        %v1011 = vpop.permute.xlu0 %1010
        %v1013 = vsel %vm180, %v1001, 0
        %v1016 = vsel %vm184, %v1011, 0
        %1018 = vmatprep.subr.bf16.mxu0 0
        %1019 = vmatpush1.bf16.msra.mxu0 0
        %1020 = vmatprep.subr.bf16.mxu0 0
        %1021 = vmatpush1.bf16.msra.mxu0 0
        %1022 = vmatprep.subr.bf16.mxu0 0
        %1023 = vmatpush1.bf16.msra.mxu0 0
        %1024 = vmatprep.subr.bf16.mxu0 0
        %1025 = vmatpush1.bf16.msra.mxu0 0
        %1026 = vmatprep.subr.bf16.mxu0 0
        %1027 = vmatpush1.bf16.msra.mxu0 0
        %1028 = vmatprep.subr.bf16.mxu0 0
        %1029 = vmatpush1.bf16.msra.mxu0 0
        %1030 = vmatprep.subr.bf16.mxu0 0
        %1031 = vmatpush1.bf16.msra.mxu0 0
        %1032 = vmatprep.subr.bf16.mxu0 0
        %1033 = vmatpush1.bf16.msra.mxu0 %v1016
        %1034 = vmatprep.subr.bf16.mxu0 0
        %1035 = vmatpush2.bf16.msra.mxu0 0
        %1036 = vmatprep.subr.bf16.mxu0 0
        %1037 = vmatpush2.bf16.msra.mxu0 0
        %1038 = vmatprep.subr.bf16.mxu0 0
        %1039 = vmatpush2.bf16.msra.mxu0 0
        %1040 = vmatprep.subr.bf16.mxu0 0
        %1041 = vmatpush2.bf16.msra.mxu0 0
        %1042 = vmatprep.subr.bf16.mxu0 0
        %1043 = vmatpush2.bf16.msra.mxu0 0
        %1044 = vmatprep.subr.bf16.mxu0 0
        %1045 = vmatpush2.bf16.msra.mxu0 0
        %1046 = vmatprep.subr.bf16.mxu0 0
        %1047 = vmatpush2.bf16.msra.mxu0 0
        %1048 = vmatprep.subr.bf16.mxu0 0
        %1049 = vmatpush2.bf16.msra.mxu0 0
        %1050 = vmatprep.mubr.bf16.mxu0 0
        %1051 = vmatmul.mubr.bf16.gmra.mxu0 %v1013
        %v1052 = vpop.f32.mrf.mxu0
        %v1053 = vadd.f32 0.0, %v1052
        %v1054 = vpop.f32.mrf.mxu0
        %v1055 = vpop.f32.mrf.mxu0
        %v1056 = vpop.f32.mrf.mxu0
        %1057 = vdwg.mxu0
        %v1058 = vadd.f32 %v998, %v1053
        %vm1059 = vcmask 523264
        %v1060 = vsel %vm1059, %v1058, 0.0
        %1061 = vadd.xlane.f32.xlu0 %v1060
        %v1062 = vpop.xlane.xlu0 %1061
        %v1063 = vmul.f32 %v1062, 0.015625
        %v1064 = vsub.f32 %v1058, %v1063
        %v1065 = vmul.f32 %v1064, %v1064
        %v1066 = vsel %vm1059, %v1065, 0.0
        %1067 = vadd.xlane.f32.xlu0 %v1066
        %v1068 = vpop.xlane.xlu0 %1067
        %v1069 = vmul.f32 %v1068, 0.015625
        %v1070 = vadd.f32 %v1069, 1e-05
        %v1071 = vrsqrt.pop %v1070
        %v1072 = vmul.f32 %v1064, %v1071
        %vm1073 = vcmp.gt.f32.partialorder %v1072, 0.0
        %v1074 = vmul.f32 %v1072, 0.2
        %v1075 = vsel %vm1073, %v1072, %v1074
        %v1076 = vpack.c.bf16 %v1075, %v1075
        %vm1077 = vcmask 519168
        %1078 = vst.msk [vmem:[%s163] sm:$0xf] %vm1077, %v1076
        %s1079 = sand.u32 %s90, 1
        %s1080 = scalar_lea.sflag [#allocation3], %s1079
        %s1081 = sand.u32 %s90, 1
        %s1082 = smul.addr %s1081, 4
        %s1083 = scalar_lea.vmem [#allocation2], %s1082
        // Predicated region
        $region29: #{tpu_custom_call.1} parent=27 // pred_check
          %p1084 = pneg %p100
        $region30: #{tpu_custom_call.1} parent=27 // pred_check_branch
          %1086 = sbr.rel (%p1084) target = $region32
        $region31: #{tpu_custom_call.1} parent=27 // pred_region
          %s1088 = ssub.s32 64, 64
          %1089 = vsyncadd %s1080, %s1088
          %s1090 = sadd.s32 %s21, %s20
          %s1091 = smul.addr %s1090, 64
          %s1092 = scalar_lea.hbm %s2, %s1091
          %s1094 = sshll.u32 %s1083, 4
          %s1095 = int_to_ptr.vmem [resolvable:$true] %s1094
          %1097 = dma.vmem_to_hbm [thread:$0]  %s1095, 64, %s1092, %s1080
        $region32: #{tpu_custom_call.1} parent=27 // pred_fallthru
          _
      $region28: #{tpu_custom_call.1} parent=5 // pred_fallthru
        _
      %p1098 = scmp.le.s32.totalorder 2, %s11
      // Predicated region
      $region33: #{tpu_custom_call.1} parent=5 // pred_check
        %p1099 = pneg %p1098
      $region34: #{tpu_custom_call.1} parent=5 // pred_check_branch
        %1101 = sbr.rel (%p1099) target = $region36
      $region35: #{tpu_custom_call.1} parent=5 // pred_region
        %s1102 = ssub.s32 %s11, 2
        // Predicated region
        $region37: #{tpu_custom_call.1} parent=35 // pred_check
          %p1103 = pneg %p106
        $region38: #{tpu_custom_call.1} parent=35 // pred_check_branch
          %1105 = sbr.rel (%p1103) target = $region40
        $region39: #{tpu_custom_call.1} parent=35 // pred_region
          %s1106 = sand.u32 %s91, 1
          %s1107 = scalar_lea.sflag [#allocation3], %s1106
          %s1108 = sand.u32 %s91, 1
          %s1109 = smul.addr %s1108, 4
          %s1110 = scalar_lea.vmem [#allocation2], %s1109
          %1111 = dma.done %s1107, 64
        $region40: #{tpu_custom_call.1} parent=35 // pred_fallthru
          _
      $region36: #{tpu_custom_call.1} parent=5 // pred_fallthru
        _
    $region6: #{tpu_custom_call.1} parent=1 // loop_footer
      %s15 = sadd.s32 1, %s11
    $region7: #{tpu_custom_call.1} parent=1 // loop_footer_branch
      %10 = sbr.rel target = $region3
    $region8: #{tpu_custom_call.1} parent=1 // loop_exit
      _
    %1112 = vsyncpa [#allocation3], 1
    %s1113 = scalar_lea.sflag [#allocation3], 1
    %1114 = vsyncpa %s1113, 1

</llo_original>
